<compile_context>
chip_gen: v7x
topology: tpu7x:2x2x1
jax: 0.10.0
libtpu: 0.0.40
codegen_flags: <defaults>
</compile_context>

<pallas_src>
import jax
import jax.numpy as jnp
from jax.experimental import pallas as pl
from jax.experimental.pallas import tpu as pltpu


def _scale_conv1x1_kernel(x_ref, w_ref, o_ref):
    # x_ref: (bt, C_in, H*W)  bf16, one batch block, native NCHW layout
    # w_ref: (C_out, C_in)    bf16, 1x1 conv weight with per-channel scale pre-folded
    # o_ref: (bt, C_out, H*W) f32, already NCHW-contiguous, lane-dense stores
    w = w_ref[...]
    # Static unroll over the (small) per-step batch block: each sample is one clean
    # (C_out,C_in) x (C_in,HW) MXU matmul with f32 accumulation.
    for i in range(x_ref.shape[0]):
        o_ref[i, :, :] = jnp.dot(w, x_ref[i, :, :],
                                 preferred_element_type=jnp.float32)


def scale_conv1x1(x_nchw, scale_nc11, weight_oihw, *, block_batch=8):
    """Matches:  x147 = x146 * x141 ;  x148 = Conv2d(C_in, C_out, 1, bias=False)(x147)."""
    n, c_in, h, w = x_nchw.shape
    c_out = weight_oihw.shape[0]
    hw = h * w

    # The scale is folded into the weight, so it must be shared across the batch.
    assert scale_nc11.shape == (1, c_in, 1, 1), scale_nc11.shape

    # Per-sample NCHW is already a contiguous (C_in, H*W) matrix -> pure reshapes only.
    # Cast activations to bf16 at the boundary (halves dominant HBM read, native MXU).
    x_mat = x_nchw.reshape(n, c_in, hw).astype(jnp.bfloat16)

    # Fold the per-channel scale into the tiny (C_out, C_in) weight once, in f32
    # (v5e VPU has no bf16), then cast to bf16 for the MXU.
    w_scaled = (weight_oihw.reshape(c_out, c_in)
                * scale_nc11.reshape(1, c_in)).astype(jnp.bfloat16)

    # Several samples per grid step amortize the per-step overhead when n > 1.
    bt = min(block_batch, n)
    while n % bt:
        bt -= 1

    cost = pl.CostEstimate(
        flops=2 * n * c_out * c_in * hw,
        transcendentals=0,
        bytes_accessed=n * c_in * hw * 2 + c_out * c_in * 2 + n * c_out * hw * 4,
    )

    out_mat = pl.pallas_call(
        _scale_conv1x1_kernel,
        out_shape=jax.ShapeDtypeStruct((n, c_out, hw), jnp.float32),
        grid=(n // bt,),
        in_specs=[
            pl.BlockSpec((bt, c_in, hw), lambda b: (b, 0, 0)),
            pl.BlockSpec((c_out, c_in), lambda b: (0, 0)),
        ],
        out_specs=pl.BlockSpec((bt, c_out, hw), lambda b: (b, 0, 0)),
        compiler_params=pltpu.CompilerParams(
            dimension_semantics=("parallel",)),
        cost_estimate=cost,
    )(x_mat, w_scaled)

    # (N, C_out, H*W) -> (N, C_out, H, W): pure reshape, already NCHW-contiguous.
    return out_mat.reshape(n, c_out, h, w)


if __name__ == "__main__":
    # Shapes from the PyTorch module.
    N, C_IN, H, W = 1, 336, 28, 28
    C_OUT = 56

    key = jax.random.PRNGKey(0)
    k1, k2, k3 = jax.random.split(key, 3)

    x141 = jax.random.normal(k1, (N, C_IN, H, W), dtype=jnp.float32)
    x146 = jax.random.normal(k2, (1, C_IN, 1, 1), dtype=jnp.float32)
    # Conv2d(336, 56, 1, bias=False) weight: (Cout, Cin, 1, 1)
    conv_w = (jax.random.normal(k3, (C_OUT, C_IN, 1, 1), dtype=jnp.float32)
              * (1.0 / jnp.sqrt(C_IN)))

    out = scale_conv1x1(x141, x146, conv_w)
    out = jax.block_until_ready(out)
    assert out.shape == (N, C_OUT, H, W), out.shape

    # (1) Matched-precision reference: same bf16 rounding of x and (w*scale), f32 accum.
    x_bf = x141.reshape(N, C_IN, H * W).astype(jnp.bfloat16).astype(jnp.float32)
    w_bf = (conv_w.reshape(C_OUT, C_IN)
            * x146.reshape(1, C_IN)).astype(jnp.bfloat16).astype(jnp.float32)
    ref_matched = jnp.einsum("oc,ncp->nop", w_bf, x_bf).reshape(N, C_OUT, H, W)
    ref_matched = jax.block_until_ready(ref_matched)
    assert jnp.allclose(out, ref_matched, atol=2e-3, rtol=2e-3), \
        float(jnp.max(jnp.abs(out - ref_matched)))

    # (2) Full-f32 module semantics (x146 * x141 -> conv), loose tol for bf16 inputs.
    x147 = x146 * x141
    ref_f32 = jax.lax.conv_general_dilated(
        x147, conv_w, window_strides=(1, 1), padding="VALID",
        dimension_numbers=("NCHW", "OIHW", "NCHW"))
    ref_f32 = jax.block_until_ready(ref_f32)
    assert jnp.allclose(out, ref_f32, atol=7e-2, rtol=7e-2), \
        float(jnp.max(jnp.abs(out - ref_f32)))

    print("KERNEL_OK")
</pallas_src>

<mosaic_0001>
module attributes {stable_mosaic.version = 11 : i64} {
  func.func @_scale_conv1x1_kernel(%arg0: i32, %arg1: memref<1x336x784xbf16, #tpu.memory_space<vmem>>, %arg2: memref<56x336xbf16, #tpu.memory_space<vmem>>, %arg3: memref<1x56x784xf32, #tpu.memory_space<vmem>>) attributes {dimension_semantics = [#tpu.dimension_semantics<parallel>], iteration_bounds = array<i64: 1>, scalar_prefetch = 0 : i64, scratch_operands = 0 : i64, tpu.core_type = #tpu.core_type<tc>, window_params = [{transform_indices = @transform_0, window_bounds = array<i64: 1, 336, 784>}, {pipeline_mode = #tpu.pipeline_mode<synchronous>, transform_indices = @transform_1, window_bounds = array<i64: 56, 336>}, {transform_indices = @transform_2, window_bounds = array<i64: 1, 56, 784>}]} {
    %c0 = arith.constant 0 : index
    %c0_0 = arith.constant 0 : index
    %0 = vector.load %arg2[%c0, %c0_0] : memref<56x336xbf16, #tpu.memory_space<vmem>>, vector<56x336xbf16>
    %c0_1 = arith.constant 0 : index
    %c0_2 = arith.constant 0 : index
    %c0_3 = arith.constant 0 : index
    %1 = vector.load %arg1[%c0_1, %c0_2, %c0_3] : memref<1x336x784xbf16, #tpu.memory_space<vmem>>, vector<1x336x784xbf16>
    %2 = vector.shape_cast %1 : vector<1x336x784xbf16> to vector<336x784xbf16>
    %cst = arith.constant dense<0.000000e+00> : vector<56x784xf32>
    %3 = tpu.matmul %0, %2, %cst {dimension_numbers = #tpu.dot_dimension_numbers<[1], [0], [0], [1], [0, 0, 1, 1], [], []>} : vector<56x336xbf16>, vector<336x784xbf16>, vector<56x784xf32> -> vector<56x784xf32>
    %c0_4 = arith.constant 0 : index
    %c0_5 = arith.constant 0 : index
    %c0_6 = arith.constant 0 : index
    %4 = vector.load %arg3[%c0_4, %c0_5, %c0_6] : memref<1x56x784xf32, #tpu.memory_space<vmem>>, vector<1x56x784xf32>
    %5 = vector.shape_cast %4 : vector<1x56x784xf32> to vector<56x784xf32>
    %6 = vector.shape_cast %3 : vector<56x784xf32> to vector<1x56x784xf32>
    tpu.vector_store %arg3[%c0_4, %c0_5, %c0_6], %6 {strides = array<i32>} : memref<1x56x784xf32, #tpu.memory_space<vmem>>, vector<1x56x784xf32>,
    return
  }
  func.func @transform_0(%arg0: i32) -> (i32, i32, i32) {
    %c0_i32 = arith.constant 0 : i32
    %c0_i32_0 = arith.constant 0 : i32
    %c0_i32_1 = arith.constant 0 : i32
    return %arg0, %c0_i32, %c0_i32_0 : i32, i32, i32
  }
  func.func @transform_1(%arg0: i32) -> (i32, i32) {
    %c0_i32 = arith.constant 0 : i32
    %c0_i32_0 = arith.constant 0 : i32
    %c0_i32_1 = arith.constant 0 : i32
    return %c0_i32, %c0_i32_0 : i32, i32
  }
  func.func @transform_2(%arg0: i32) -> (i32, i32, i32) {
    %c0_i32 = arith.constant 0 : i32
    %c0_i32_0 = arith.constant 0 : i32
    %c0_i32_1 = arith.constant 0 : i32
    return %arg0, %c0_i32, %c0_i32_0 : i32, i32, i32
  }
}

</mosaic_0001>

<llo_original>
// kernel: tpu_custom_call.1
$region0: #{tpu_custom_call.1}
  #allocation0 [shape = 'u32[]', space=smem, size = 0x4, offset = 0x4, fixed_abs, tag = 'smem constant byte address 0x4 - core index']
  #allocation1 [shape = 'u32[144,128]{1,0:T(1,128)}', space=vmem, size = 0x12000, scoped, tag = 'internal scratch']
  %s0 = inlined_call_operand.hbm [shape: bf16[1,336,784], index: 0, kind: input, shape index: {}]
  %s1 = inlined_call_operand.hbm [shape: bf16[56,336], index: 1, kind: input, shape index: {}]
  %s2 = inlined_call_operand.hbm [shape: f32[1,56,784], index: 2, kind: output, shape index: {}]
  %s3 = sld [smem:[#allocation0]]
  $region26: #{tpu_custom_call.1} parent=0
    _
  %s5 = ssub.s32 1, %s3
  %s6 = scalar_select 0, %s5, %s3
  $region1: #{tpu_custom_call.1} parent=0
    #allocation2 [shape = 'u8[602112]{0}', space=vmem, size = 0x93000, scoped, tag = 'input window, operand 0, single buffered']
    #allocation3 [shape = 's32[1]{0}', space=sflag, size = 0x4, scoped, tag = 'scoped memory for tpu_custom_call.1']
    #allocation4 [shape = 's32[1]{0}', space=sflag, size = 0x4, scoped, tag = 'scoped memory for tpu_custom_call.1']
    #allocation5 [shape = 'u8[43008]{0}', space=vmem, size = 0xa800, scoped, tag = 'input window, operand 1, single buffered']
    #allocation6 [shape = 's32[1]{0}', space=sflag, size = 0x4, scoped, tag = 'scoped memory for tpu_custom_call.1']
    #allocation7 [shape = 'u8[200704]{0}', space=vmem, size = 0x31000, scoped, tag = 'output window, operand 0, single buffered']
    %7 = vsyncpa [#allocation3], 0
    %8 = vsyncpa [#allocation6], 0
    %9 = vsyncpa [#allocation4], 0
    // Predicated region
    $region2: #{tpu_custom_call.1} parent=1 // pred_check
      _
    $region3: #{tpu_custom_call.1} parent=1 // pred_check_branch
      %11 = sbr.rel (0) target = $region5
    $region4: #{tpu_custom_call.1} parent=1 // pred_region
      %s13 = ssub.s32 18816, 18816
      %14 = vsyncadd [#allocation3], %s13
      %s15 = sshll.u32 [#allocation2], 4
      %s16 = int_to_ptr.vmem [resolvable:$true] %s15
      %21 = dma.hbm_to_vmem [thread:$0]  %s0, 18816, %s16, [#allocation3], 448, 448, 28
    $region5: #{tpu_custom_call.1} parent=1 // pred_fallthru
      _
    // Predicated region
    $region6: #{tpu_custom_call.1} parent=1 // pred_check
      _
    $region7: #{tpu_custom_call.1} parent=1 // pred_check_branch
      %23 = sbr.rel (0) target = $region9
    $region8: #{tpu_custom_call.1} parent=1 // pred_region
      %s25 = ssub.s32 1344, 1344
      %26 = vsyncadd [#allocation6], %s25
      %s27 = sshll.u32 [#allocation5], 4
      %s28 = int_to_ptr.vmem [resolvable:$true] %s27
      %33 = dma.hbm_to_vmem [thread:$0]  %s1, 1344, %s28, [#allocation6], 192, 192, 12
    $region9: #{tpu_custom_call.1} parent=1 // pred_fallthru
      _
    // Predicated region
    $region10: #{tpu_custom_call.1} parent=1 // pred_check
      _
    $region11: #{tpu_custom_call.1} parent=1 // pred_check_branch
      %35 = sbr.rel (0) target = $region13
    $region12: #{tpu_custom_call.1} parent=1 // pred_region
      %36 = dma.done [#allocation3], 18816
    $region13: #{tpu_custom_call.1} parent=1 // pred_fallthru
      _
    // Predicated region
    $region14: #{tpu_custom_call.1} parent=1 // pred_check
      _
    $region15: #{tpu_custom_call.1} parent=1 // pred_check_branch
      %38 = sbr.rel (0) target = $region17
    $region16: #{tpu_custom_call.1} parent=1 // pred_region
      %39 = dma.done [#allocation6], 1344
    $region17: #{tpu_custom_call.1} parent=1 // pred_fallthru
      _
    %v41 = vld [vmem:[#allocation5] sm:$0xff]
    %v42 = vld [vmem:[#allocation5 + $0x8] sm:$0xf]
    %v43 = vld [vmem:[#allocation5 + $0xc] sm:$0xff]
    %v44 = vld [vmem:[#allocation5 + $0x14] sm:$0xf]
    %v45 = vld [vmem:[#allocation5 + $0x18] sm:$0xff]
    %v46 = vld [vmem:[#allocation5 + $0x20] sm:$0xf]
    %v47 = vld [vmem:[#allocation5 + $0x24] sm:$0xff]
    %v48 = vld [vmem:[#allocation5 + $0x2c] sm:$0xf]
    %v49 = vld [vmem:[#allocation5 + $0x30] sm:$0xff]
    %v50 = vld [vmem:[#allocation5 + $0x38] sm:$0xf]
    %v51 = vld [vmem:[#allocation5 + $0x3c] sm:$0xff]
    %v52 = vld [vmem:[#allocation5 + $0x44] sm:$0xf]
    %v53 = vld [vmem:[#allocation5 + $0x48] sm:$0xff]
    %v54 = vld [vmem:[#allocation5 + $0x50] sm:$0xf]
    %v55 = vld [vmem:[#allocation2] sm:$0xff]
    %v56 = vld [vmem:[#allocation2 + $0x8] sm:$0xff]
    %v57 = vld [vmem:[#allocation2 + $0x10] sm:$0xff]
    %v58 = vld [vmem:[#allocation2 + $0x18] sm:$0xf]
    %v59 = vld [vmem:[#allocation2 + $0x1c] sm:$0xff]
    %v60 = vld [vmem:[#allocation2 + $0x24] sm:$0xff]
    %v61 = vld [vmem:[#allocation2 + $0x2c] sm:$0xff]
    %v62 = vld [vmem:[#allocation2 + $0x34] sm:$0xf]
    %v63 = vld [vmem:[#allocation2 + $0x38] sm:$0xff]
    %v64 = vld [vmem:[#allocation2 + $0x40] sm:$0xff]
    %v65 = vld [vmem:[#allocation2 + $0x48] sm:$0xff]
    %v66 = vld [vmem:[#allocation2 + $0x50] sm:$0xf]
    %v67 = vld [vmem:[#allocation2 + $0x54] sm:$0xff]
    %v68 = vld [vmem:[#allocation2 + $0x5c] sm:$0xff]
    %v69 = vld [vmem:[#allocation2 + $0x64] sm:$0xff]
    %v70 = vld [vmem:[#allocation2 + $0x6c] sm:$0xf]
    %v71 = vld [vmem:[#allocation2 + $0x70] sm:$0xff]
    %v72 = vld [vmem:[#allocation2 + $0x78] sm:$0xff]
    %v73 = vld [vmem:[#allocation2 + $0x80] sm:$0xff]
    %v74 = vld [vmem:[#allocation2 + $0x88] sm:$0xf]
    %v75 = vld [vmem:[#allocation2 + $0x8c] sm:$0xff]
    %v76 = vld [vmem:[#allocation2 + $0x94] sm:$0xff]
    %v77 = vld [vmem:[#allocation2 + $0x9c] sm:$0xff]
    %v78 = vld [vmem:[#allocation2 + $0xa4] sm:$0xf]
    %v79 = vld [vmem:[#allocation2 + $0xa8] sm:$0xff]
    %v80 = vld [vmem:[#allocation2 + $0xb0] sm:$0xff]
    %v81 = vld [vmem:[#allocation2 + $0xb8] sm:$0xff]
    %v82 = vld [vmem:[#allocation2 + $0xc0] sm:$0xf]
    %v83 = vld [vmem:[#allocation2 + $0xc4] sm:$0xff]
    %v84 = vld [vmem:[#allocation2 + $0xcc] sm:$0xff]
    %v85 = vld [vmem:[#allocation2 + $0xd4] sm:$0xff]
    %v86 = vld [vmem:[#allocation2 + $0xdc] sm:$0xf]
    %v87 = vld [vmem:[#allocation2 + $0xe0] sm:$0xff]
    %v88 = vld [vmem:[#allocation2 + $0xe8] sm:$0xff]
    %v89 = vld [vmem:[#allocation2 + $0xf0] sm:$0xff]
    %v90 = vld [vmem:[#allocation2 + $0xf8] sm:$0xf]
    %v91 = vld [vmem:[#allocation2 + $0xfc] sm:$0xff]
    %v92 = vld [vmem:[#allocation2 + $0x104] sm:$0xff]
    %v93 = vld [vmem:[#allocation2 + $0x10c] sm:$0xff]
    %v94 = vld [vmem:[#allocation2 + $0x114] sm:$0xf]
    %v95 = vld [vmem:[#allocation2 + $0x118] sm:$0xff]
    %v96 = vld [vmem:[#allocation2 + $0x120] sm:$0xff]
    %v97 = vld [vmem:[#allocation2 + $0x128] sm:$0xff]
    %v98 = vld [vmem:[#allocation2 + $0x130] sm:$0xf]
    %v99 = vld [vmem:[#allocation2 + $0x134] sm:$0xff]
    %v100 = vld [vmem:[#allocation2 + $0x13c] sm:$0xff]
    %v101 = vld [vmem:[#allocation2 + $0x144] sm:$0xff]
    %v102 = vld [vmem:[#allocation2 + $0x14c] sm:$0xf]
    %v103 = vld [vmem:[#allocation2 + $0x150] sm:$0xff]
    %v104 = vld [vmem:[#allocation2 + $0x158] sm:$0xff]
    %v105 = vld [vmem:[#allocation2 + $0x160] sm:$0xff]
    %v106 = vld [vmem:[#allocation2 + $0x168] sm:$0xf]
    %v107 = vld [vmem:[#allocation2 + $0x16c] sm:$0xff]
    %v108 = vld [vmem:[#allocation2 + $0x174] sm:$0xff]
    %v109 = vld [vmem:[#allocation2 + $0x17c] sm:$0xff]
    %v110 = vld [vmem:[#allocation2 + $0x184] sm:$0xf]
    %v111 = vld [vmem:[#allocation2 + $0x188] sm:$0xff]
    %v112 = vld [vmem:[#allocation2 + $0x190] sm:$0xff]
    %v113 = vld [vmem:[#allocation2 + $0x198] sm:$0xff]
    %v114 = vld [vmem:[#allocation2 + $0x1a0] sm:$0xf]
    %v115 = vld [vmem:[#allocation2 + $0x1a4] sm:$0xff]
    %v116 = vld [vmem:[#allocation2 + $0x1ac] sm:$0xff]
    %v117 = vld [vmem:[#allocation2 + $0x1b4] sm:$0xff]
    %v118 = vld [vmem:[#allocation2 + $0x1bc] sm:$0xf]
    %v119 = vld [vmem:[#allocation2 + $0x1c0] sm:$0xff]
    %v120 = vld [vmem:[#allocation2 + $0x1c8] sm:$0xff]
    %v121 = vld [vmem:[#allocation2 + $0x1d0] sm:$0xff]
    %v122 = vld [vmem:[#allocation2 + $0x1d8] sm:$0xf]
    %v123 = vld [vmem:[#allocation2 + $0x1dc] sm:$0xff]
    %v124 = vld [vmem:[#allocation2 + $0x1e4] sm:$0xff]
    %v125 = vld [vmem:[#allocation2 + $0x1ec] sm:$0xff]
    %v126 = vld [vmem:[#allocation2 + $0x1f4] sm:$0xf]
    %v127 = vld [vmem:[#allocation2 + $0x1f8] sm:$0xff]
    %v128 = vld [vmem:[#allocation2 + $0x200] sm:$0xff]
    %v129 = vld [vmem:[#allocation2 + $0x208] sm:$0xff]
    %v130 = vld [vmem:[#allocation2 + $0x210] sm:$0xf]
    %v131 = vld [vmem:[#allocation2 + $0x214] sm:$0xff]
    %v132 = vld [vmem:[#allocation2 + $0x21c] sm:$0xff]
    %v133 = vld [vmem:[#allocation2 + $0x224] sm:$0xff]
    %v134 = vld [vmem:[#allocation2 + $0x22c] sm:$0xf]
    %v135 = vld [vmem:[#allocation2 + $0x230] sm:$0xff]
    %v136 = vld [vmem:[#allocation2 + $0x238] sm:$0xff]
    %v137 = vld [vmem:[#allocation2 + $0x240] sm:$0xff]
    %v138 = vld [vmem:[#allocation2 + $0x248] sm:$0xf]
    %v139 = vld [vmem:[#allocation2 + $0x24c] sm:$0xff]
    %v140 = vld [vmem:[#allocation2 + $0x254] sm:$0xff]
    %v141 = vld [vmem:[#allocation2 + $0x25c] sm:$0xff]
    %v142 = vld [vmem:[#allocation2 + $0x264] sm:$0xf]
    %v143 = vld [vmem:[#allocation2 + $0x268] sm:$0xff]
    %v144 = vld [vmem:[#allocation2 + $0x270] sm:$0xff]
    %v145 = vld [vmem:[#allocation2 + $0x278] sm:$0xff]
    %v146 = vld [vmem:[#allocation2 + $0x280] sm:$0xf]
    %v147 = vld [vmem:[#allocation2 + $0x284] sm:$0xff]
    %v148 = vld [vmem:[#allocation2 + $0x28c] sm:$0xff]
    %v149 = vld [vmem:[#allocation2 + $0x294] sm:$0xff]
    %v150 = vld [vmem:[#allocation2 + $0x29c] sm:$0xf]
    %v151 = vld [vmem:[#allocation2 + $0x2a0] sm:$0xff]
    %v152 = vld [vmem:[#allocation2 + $0x2a8] sm:$0xff]
    %v153 = vld [vmem:[#allocation2 + $0x2b0] sm:$0xff]
    %v154 = vld [vmem:[#allocation2 + $0x2b8] sm:$0xf]
    %v155 = vld [vmem:[#allocation2 + $0x2bc] sm:$0xff]
    %v156 = vld [vmem:[#allocation2 + $0x2c4] sm:$0xff]
    %v157 = vld [vmem:[#allocation2 + $0x2cc] sm:$0xff]
    %v158 = vld [vmem:[#allocation2 + $0x2d4] sm:$0xf]
    %v159 = vld [vmem:[#allocation2 + $0x2d8] sm:$0xff]
    %v160 = vld [vmem:[#allocation2 + $0x2e0] sm:$0xff]
    %v161 = vld [vmem:[#allocation2 + $0x2e8] sm:$0xff]
    %v162 = vld [vmem:[#allocation2 + $0x2f0] sm:$0xf]
    %v163 = vld [vmem:[#allocation2 + $0x2f4] sm:$0xff]
    %v164 = vld [vmem:[#allocation2 + $0x2fc] sm:$0xff]
    %v165 = vld [vmem:[#allocation2 + $0x304] sm:$0xff]
    %v166 = vld [vmem:[#allocation2 + $0x30c] sm:$0xf]
    %v167 = vld [vmem:[#allocation2 + $0x310] sm:$0xff]
    %v168 = vld [vmem:[#allocation2 + $0x318] sm:$0xff]
    %v169 = vld [vmem:[#allocation2 + $0x320] sm:$0xff]
    %v170 = vld [vmem:[#allocation2 + $0x328] sm:$0xf]
    %v171 = vld [vmem:[#allocation2 + $0x32c] sm:$0xff]
    %v172 = vld [vmem:[#allocation2 + $0x334] sm:$0xff]
    %v173 = vld [vmem:[#allocation2 + $0x33c] sm:$0xff]
    %v174 = vld [vmem:[#allocation2 + $0x344] sm:$0xf]
    %v175 = vld [vmem:[#allocation2 + $0x348] sm:$0xff]
    %v176 = vld [vmem:[#allocation2 + $0x350] sm:$0xff]
    %v177 = vld [vmem:[#allocation2 + $0x358] sm:$0xff]
    %v178 = vld [vmem:[#allocation2 + $0x360] sm:$0xf]
    %v179 = vld [vmem:[#allocation2 + $0x364] sm:$0xff]
    %v180 = vld [vmem:[#allocation2 + $0x36c] sm:$0xff]
    %v181 = vld [vmem:[#allocation2 + $0x374] sm:$0xff]
    %v182 = vld [vmem:[#allocation2 + $0x37c] sm:$0xf]
    %v183 = vld [vmem:[#allocation2 + $0x380] sm:$0xff]
    %v184 = vld [vmem:[#allocation2 + $0x388] sm:$0xff]
    %v185 = vld [vmem:[#allocation2 + $0x390] sm:$0xff]
    %v186 = vld [vmem:[#allocation2 + $0x398] sm:$0xf]
    %v187 = vld [vmem:[#allocation2 + $0x39c] sm:$0xff]
    %v188 = vld [vmem:[#allocation2 + $0x3a4] sm:$0xff]
    %v189 = vld [vmem:[#allocation2 + $0x3ac] sm:$0xff]
    %v190 = vld [vmem:[#allocation2 + $0x3b4] sm:$0xf]
    %v191 = vld [vmem:[#allocation2 + $0x3b8] sm:$0xff]
    %v192 = vld [vmem:[#allocation2 + $0x3c0] sm:$0xff]
    %v193 = vld [vmem:[#allocation2 + $0x3c8] sm:$0xff]
    %v194 = vld [vmem:[#allocation2 + $0x3d0] sm:$0xf]
    %v195 = vld [vmem:[#allocation2 + $0x3d4] sm:$0xff]
    %v196 = vld [vmem:[#allocation2 + $0x3dc] sm:$0xff]
    %v197 = vld [vmem:[#allocation2 + $0x3e4] sm:$0xff]
    %v198 = vld [vmem:[#allocation2 + $0x3ec] sm:$0xf]
    %v199 = vld [vmem:[#allocation2 + $0x3f0] sm:$0xff]
    %v200 = vld [vmem:[#allocation2 + $0x3f8] sm:$0xff]
    %v201 = vld [vmem:[#allocation2 + $0x400] sm:$0xff]
    %v202 = vld [vmem:[#allocation2 + $0x408] sm:$0xf]
    %v203 = vld [vmem:[#allocation2 + $0x40c] sm:$0xff]
    %v204 = vld [vmem:[#allocation2 + $0x414] sm:$0xff]
    %v205 = vld [vmem:[#allocation2 + $0x41c] sm:$0xff]
    %v206 = vld [vmem:[#allocation2 + $0x424] sm:$0xf]
    %v207 = vld [vmem:[#allocation2 + $0x428] sm:$0xff]
    %v208 = vld [vmem:[#allocation2 + $0x430] sm:$0xff]
    %v209 = vld [vmem:[#allocation2 + $0x438] sm:$0xff]
    %v210 = vld [vmem:[#allocation2 + $0x440] sm:$0xf]
    %v211 = vld [vmem:[#allocation2 + $0x444] sm:$0xff]
    %v212 = vld [vmem:[#allocation2 + $0x44c] sm:$0xff]
    %v213 = vld [vmem:[#allocation2 + $0x454] sm:$0xff]
    %v214 = vld [vmem:[#allocation2 + $0x45c] sm:$0xf]
    %v215 = vld [vmem:[#allocation2 + $0x460] sm:$0xff]
    %v216 = vld [vmem:[#allocation2 + $0x468] sm:$0xff]
    %v217 = vld [vmem:[#allocation2 + $0x470] sm:$0xff]
    %v218 = vld [vmem:[#allocation2 + $0x478] sm:$0xf]
    %v219 = vld [vmem:[#allocation2 + $0x47c] sm:$0xff]
    %v220 = vld [vmem:[#allocation2 + $0x484] sm:$0xff]
    %v221 = vld [vmem:[#allocation2 + $0x48c] sm:$0xff]
    %v222 = vld [vmem:[#allocation2 + $0x494] sm:$0xf]
    %v237 = vunpack.c.l.b16 %v41
    %v238 = vunpack.c.h.b16 %v41
    %v239 = vunpack.c.l.b16 %v42
    %v240 = vunpack.c.l.b16 %v43
    %v241 = vunpack.c.h.b16 %v43
    %v242 = vunpack.c.l.b16 %v44
    %v243 = vunpack.c.l.b16 %v45
    %v244 = vunpack.c.h.b16 %v45
    %v245 = vunpack.c.l.b16 %v46
    %v246 = vunpack.c.l.b16 %v47
    %v247 = vunpack.c.h.b16 %v47
    %v248 = vunpack.c.l.b16 %v48
    %v249 = vunpack.c.l.b16 %v49
    %v250 = vunpack.c.h.b16 %v49
    %v251 = vunpack.c.l.b16 %v50
    %v252 = vunpack.c.l.b16 %v51
    %v253 = vunpack.c.h.b16 %v51
    %v254 = vunpack.c.l.b16 %v52
    %v255 = vunpack.c.l.b16 %v53
    %v256 = vunpack.c.h.b16 %v53
    %v257 = vunpack.c.l.b16 %v54
    %v258 = vpack.c.b16 %v240, %v237
    %v259 = vpack.c.b16 %v241, %v238
    %v260 = vpack.c.b16 %v242, %v239
    %v261 = vpack.c.b16 %v246, %v243
    %v262 = vpack.c.b16 %v247, %v244
    %v263 = vpack.c.b16 %v248, %v245
    %v264 = vpack.c.b16 %v252, %v249
    %v265 = vpack.c.b16 %v253, %v250
    %v266 = vpack.c.b16 %v254, %v251
    %v267 = vpack.c.b16 %v255, %v255
    %v268 = vpack.c.b16 %v256, %v256
    %v269 = vpack.c.b16 %v257, %v257
    %v446 = vunpack.c.l.b16 %v55
    %v447 = vunpack.c.h.b16 %v55
    %v448 = vunpack.c.l.b16 %v56
    %v449 = vunpack.c.h.b16 %v56
    %v450 = vunpack.c.l.b16 %v57
    %v451 = vunpack.c.h.b16 %v57
    %v452 = vunpack.c.l.b16 %v58
    %v453 = vunpack.c.l.b16 %v59
    %v454 = vunpack.c.h.b16 %v59
    %v455 = vunpack.c.l.b16 %v60
    %v456 = vunpack.c.h.b16 %v60
    %v457 = vunpack.c.l.b16 %v61
    %v458 = vunpack.c.h.b16 %v61
    %v459 = vunpack.c.l.b16 %v62
    %v460 = vunpack.c.l.b16 %v63
    %v461 = vunpack.c.h.b16 %v63
    %v462 = vunpack.c.l.b16 %v64
    %v463 = vunpack.c.h.b16 %v64
    %v464 = vunpack.c.l.b16 %v65
    %v465 = vunpack.c.h.b16 %v65
    %v466 = vunpack.c.l.b16 %v66
    %v467 = vunpack.c.l.b16 %v67
    %v468 = vunpack.c.h.b16 %v67
    %v469 = vunpack.c.l.b16 %v68
    %v470 = vunpack.c.h.b16 %v68
    %v471 = vunpack.c.l.b16 %v69
    %v472 = vunpack.c.h.b16 %v69
    %v473 = vunpack.c.l.b16 %v70
    %v474 = vunpack.c.l.b16 %v71
    %v475 = vunpack.c.h.b16 %v71
    %v476 = vunpack.c.l.b16 %v72
    %v477 = vunpack.c.h.b16 %v72
    %v478 = vunpack.c.l.b16 %v73
    %v479 = vunpack.c.h.b16 %v73
    %v480 = vunpack.c.l.b16 %v74
    %v481 = vunpack.c.l.b16 %v75
    %v482 = vunpack.c.h.b16 %v75
    %v483 = vunpack.c.l.b16 %v76
    %v484 = vunpack.c.h.b16 %v76
    %v485 = vunpack.c.l.b16 %v77
    %v486 = vunpack.c.h.b16 %v77
    %v487 = vunpack.c.l.b16 %v78
    %v488 = vunpack.c.l.b16 %v79
    %v489 = vunpack.c.h.b16 %v79
    %v490 = vunpack.c.l.b16 %v80
    %v491 = vunpack.c.h.b16 %v80
    %v492 = vunpack.c.l.b16 %v81
    %v493 = vunpack.c.h.b16 %v81
    %v494 = vunpack.c.l.b16 %v82
    %v495 = vunpack.c.l.b16 %v83
    %v496 = vunpack.c.h.b16 %v83
    %v497 = vunpack.c.l.b16 %v84
    %v498 = vunpack.c.h.b16 %v84
    %v499 = vunpack.c.l.b16 %v85
    %v500 = vunpack.c.h.b16 %v85
    %v501 = vunpack.c.l.b16 %v86
    %v502 = vunpack.c.l.b16 %v87
    %v503 = vunpack.c.h.b16 %v87
    %v504 = vunpack.c.l.b16 %v88
    %v505 = vunpack.c.h.b16 %v88
    %v506 = vunpack.c.l.b16 %v89
    %v507 = vunpack.c.h.b16 %v89
    %v508 = vunpack.c.l.b16 %v90
    %v509 = vunpack.c.l.b16 %v91
    %v510 = vunpack.c.h.b16 %v91
    %v511 = vunpack.c.l.b16 %v92
    %v512 = vunpack.c.h.b16 %v92
    %v513 = vunpack.c.l.b16 %v93
    %v514 = vunpack.c.h.b16 %v93
    %v515 = vunpack.c.l.b16 %v94
    %v516 = vunpack.c.l.b16 %v95
    %v517 = vunpack.c.h.b16 %v95
    %v518 = vunpack.c.l.b16 %v96
    %v519 = vunpack.c.h.b16 %v96
    %v520 = vunpack.c.l.b16 %v97
    %v521 = vunpack.c.h.b16 %v97
    %v522 = vunpack.c.l.b16 %v98
    %v523 = vunpack.c.l.b16 %v99
    %v524 = vunpack.c.h.b16 %v99
    %v525 = vunpack.c.l.b16 %v100
    %v526 = vunpack.c.h.b16 %v100
    %v527 = vunpack.c.l.b16 %v101
    %v528 = vunpack.c.h.b16 %v101
    %v529 = vunpack.c.l.b16 %v102
    %v530 = vunpack.c.l.b16 %v103
    %v531 = vunpack.c.h.b16 %v103
    %v532 = vunpack.c.l.b16 %v104
    %v533 = vunpack.c.h.b16 %v104
    %v534 = vunpack.c.l.b16 %v105
    %v535 = vunpack.c.h.b16 %v105
    %v536 = vunpack.c.l.b16 %v106
    %v537 = vunpack.c.l.b16 %v107
    %v538 = vunpack.c.h.b16 %v107
    %v539 = vunpack.c.l.b16 %v108
    %v540 = vunpack.c.h.b16 %v108
    %v541 = vunpack.c.l.b16 %v109
    %v542 = vunpack.c.h.b16 %v109
    %v543 = vunpack.c.l.b16 %v110
    %v544 = vunpack.c.l.b16 %v111
    %v545 = vunpack.c.h.b16 %v111
    %v546 = vunpack.c.l.b16 %v112
    %v547 = vunpack.c.h.b16 %v112
    %v548 = vunpack.c.l.b16 %v113
    %v549 = vunpack.c.h.b16 %v113
    %v550 = vunpack.c.l.b16 %v114
    %v551 = vunpack.c.l.b16 %v115
    %v552 = vunpack.c.h.b16 %v115
    %v553 = vunpack.c.l.b16 %v116
    %v554 = vunpack.c.h.b16 %v116
    %v555 = vunpack.c.l.b16 %v117
    %v556 = vunpack.c.h.b16 %v117
    %v557 = vunpack.c.l.b16 %v118
    %v558 = vunpack.c.l.b16 %v119
    %v559 = vunpack.c.h.b16 %v119
    %v560 = vunpack.c.l.b16 %v120
    %v561 = vunpack.c.h.b16 %v120
    %v562 = vunpack.c.l.b16 %v121
    %v563 = vunpack.c.h.b16 %v121
    %v564 = vunpack.c.l.b16 %v122
    %v565 = vunpack.c.l.b16 %v123
    %v566 = vunpack.c.h.b16 %v123
    %v567 = vunpack.c.l.b16 %v124
    %v568 = vunpack.c.h.b16 %v124
    %v569 = vunpack.c.l.b16 %v125
    %v570 = vunpack.c.h.b16 %v125
    %v571 = vunpack.c.l.b16 %v126
    %v572 = vunpack.c.l.b16 %v127
    %v573 = vunpack.c.h.b16 %v127
    %v574 = vunpack.c.l.b16 %v128
    %v575 = vunpack.c.h.b16 %v128
    %v576 = vunpack.c.l.b16 %v129
    %v577 = vunpack.c.h.b16 %v129
    %v578 = vunpack.c.l.b16 %v130
    %v579 = vunpack.c.l.b16 %v131
    %v580 = vunpack.c.h.b16 %v131
    %v581 = vunpack.c.l.b16 %v132
    %v582 = vunpack.c.h.b16 %v132
    %v583 = vunpack.c.l.b16 %v133
    %v584 = vunpack.c.h.b16 %v133
    %v585 = vunpack.c.l.b16 %v134
    %v586 = vunpack.c.l.b16 %v135
    %v587 = vunpack.c.h.b16 %v135
    %v588 = vunpack.c.l.b16 %v136
    %v589 = vunpack.c.h.b16 %v136
    %v590 = vunpack.c.l.b16 %v137
    %v591 = vunpack.c.h.b16 %v137
    %v592 = vunpack.c.l.b16 %v138
    %v593 = vunpack.c.l.b16 %v139
    %v594 = vunpack.c.h.b16 %v139
    %v595 = vunpack.c.l.b16 %v140
    %v596 = vunpack.c.h.b16 %v140
    %v597 = vunpack.c.l.b16 %v141
    %v598 = vunpack.c.h.b16 %v141
    %v599 = vunpack.c.l.b16 %v142
    %v600 = vunpack.c.l.b16 %v143
    %v601 = vunpack.c.h.b16 %v143
    %v602 = vunpack.c.l.b16 %v144
    %v603 = vunpack.c.h.b16 %v144
    %v604 = vunpack.c.l.b16 %v145
    %v605 = vunpack.c.h.b16 %v145
    %v606 = vunpack.c.l.b16 %v146
    %v607 = vunpack.c.l.b16 %v147
    %v608 = vunpack.c.h.b16 %v147
    %v609 = vunpack.c.l.b16 %v148
    %v610 = vunpack.c.h.b16 %v148
    %v611 = vunpack.c.l.b16 %v149
    %v612 = vunpack.c.h.b16 %v149
    %v613 = vunpack.c.l.b16 %v150
    %v614 = vunpack.c.l.b16 %v151
    %v615 = vunpack.c.h.b16 %v151
    %v616 = vunpack.c.l.b16 %v152
    %v617 = vunpack.c.h.b16 %v152
    %v618 = vunpack.c.l.b16 %v153
    %v619 = vunpack.c.h.b16 %v153
    %v620 = vunpack.c.l.b16 %v154
    %v621 = vunpack.c.l.b16 %v155
    %v622 = vunpack.c.h.b16 %v155
    %v623 = vunpack.c.l.b16 %v156
    %v624 = vunpack.c.h.b16 %v156
    %v625 = vunpack.c.l.b16 %v157
    %v626 = vunpack.c.h.b16 %v157
    %v627 = vunpack.c.l.b16 %v158
    %v628 = vunpack.c.l.b16 %v159
    %v629 = vunpack.c.h.b16 %v159
    %v630 = vunpack.c.l.b16 %v160
    %v631 = vunpack.c.h.b16 %v160
    %v632 = vunpack.c.l.b16 %v161
    %v633 = vunpack.c.h.b16 %v161
    %v634 = vunpack.c.l.b16 %v162
    %v635 = vunpack.c.l.b16 %v163
    %v636 = vunpack.c.h.b16 %v163
    %v637 = vunpack.c.l.b16 %v164
    %v638 = vunpack.c.h.b16 %v164
    %v639 = vunpack.c.l.b16 %v165
    %v640 = vunpack.c.h.b16 %v165
    %v641 = vunpack.c.l.b16 %v166
    %v642 = vunpack.c.l.b16 %v167
    %v643 = vunpack.c.h.b16 %v167
    %v644 = vunpack.c.l.b16 %v168
    %v645 = vunpack.c.h.b16 %v168
    %v646 = vunpack.c.l.b16 %v169
    %v647 = vunpack.c.h.b16 %v169
    %v648 = vunpack.c.l.b16 %v170
    %v649 = vunpack.c.l.b16 %v171
    %v650 = vunpack.c.h.b16 %v171
    %v651 = vunpack.c.l.b16 %v172
    %v652 = vunpack.c.h.b16 %v172
    %v653 = vunpack.c.l.b16 %v173
    %v654 = vunpack.c.h.b16 %v173
    %v655 = vunpack.c.l.b16 %v174
    %v656 = vunpack.c.l.b16 %v175
    %v657 = vunpack.c.h.b16 %v175
    %v658 = vunpack.c.l.b16 %v176
    %v659 = vunpack.c.h.b16 %v176
    %v660 = vunpack.c.l.b16 %v177
    %v661 = vunpack.c.h.b16 %v177
    %v662 = vunpack.c.l.b16 %v178
    %v663 = vunpack.c.l.b16 %v179
    %v664 = vunpack.c.h.b16 %v179
    %v665 = vunpack.c.l.b16 %v180
    %v666 = vunpack.c.h.b16 %v180
    %v667 = vunpack.c.l.b16 %v181
    %v668 = vunpack.c.h.b16 %v181
    %v669 = vunpack.c.l.b16 %v182
    %v670 = vunpack.c.l.b16 %v183
    %v671 = vunpack.c.h.b16 %v183
    %v672 = vunpack.c.l.b16 %v184
    %v673 = vunpack.c.h.b16 %v184
    %v674 = vunpack.c.l.b16 %v185
    %v675 = vunpack.c.h.b16 %v185
    %v676 = vunpack.c.l.b16 %v186
    %v677 = vunpack.c.l.b16 %v187
    %v678 = vunpack.c.h.b16 %v187
    %v679 = vunpack.c.l.b16 %v188
    %v680 = vunpack.c.h.b16 %v188
    %v681 = vunpack.c.l.b16 %v189
    %v682 = vunpack.c.h.b16 %v189
    %v683 = vunpack.c.l.b16 %v190
    %v684 = vunpack.c.l.b16 %v191
    %v685 = vunpack.c.h.b16 %v191
    %v686 = vunpack.c.l.b16 %v192
    %v687 = vunpack.c.h.b16 %v192
    %v688 = vunpack.c.l.b16 %v193
    %v689 = vunpack.c.h.b16 %v193
    %v690 = vunpack.c.l.b16 %v194
    %v691 = vunpack.c.l.b16 %v195
    %v692 = vunpack.c.h.b16 %v195
    %v693 = vunpack.c.l.b16 %v196
    %v694 = vunpack.c.h.b16 %v196
    %v695 = vunpack.c.l.b16 %v197
    %v696 = vunpack.c.h.b16 %v197
    %v697 = vunpack.c.l.b16 %v198
    %v698 = vunpack.c.l.b16 %v199
    %v699 = vunpack.c.h.b16 %v199
    %v700 = vunpack.c.l.b16 %v200
    %v701 = vunpack.c.h.b16 %v200
    %v702 = vunpack.c.l.b16 %v201
    %v703 = vunpack.c.h.b16 %v201
    %v704 = vunpack.c.l.b16 %v202
    %v705 = vunpack.c.l.b16 %v203
    %v706 = vunpack.c.h.b16 %v203
    %v707 = vunpack.c.l.b16 %v204
    %v708 = vunpack.c.h.b16 %v204
    %v709 = vunpack.c.l.b16 %v205
    %v710 = vunpack.c.h.b16 %v205
    %v711 = vunpack.c.l.b16 %v206
    %v712 = vunpack.c.l.b16 %v207
    %v713 = vunpack.c.h.b16 %v207
    %v714 = vunpack.c.l.b16 %v208
    %v715 = vunpack.c.h.b16 %v208
    %v716 = vunpack.c.l.b16 %v209
    %v717 = vunpack.c.h.b16 %v209
    %v718 = vunpack.c.l.b16 %v210
    %v719 = vunpack.c.l.b16 %v211
    %v720 = vunpack.c.h.b16 %v211
    %v721 = vunpack.c.l.b16 %v212
    %v722 = vunpack.c.h.b16 %v212
    %v723 = vunpack.c.l.b16 %v213
    %v724 = vunpack.c.h.b16 %v213
    %v725 = vunpack.c.l.b16 %v214
    %v726 = vunpack.c.l.b16 %v215
    %v727 = vunpack.c.h.b16 %v215
    %v728 = vunpack.c.l.b16 %v216
    %v729 = vunpack.c.h.b16 %v216
    %v730 = vunpack.c.l.b16 %v217
    %v731 = vunpack.c.h.b16 %v217
    %v732 = vunpack.c.l.b16 %v218
    %v733 = vunpack.c.l.b16 %v219
    %v734 = vunpack.c.h.b16 %v219
    %v735 = vunpack.c.l.b16 %v220
    %v736 = vunpack.c.h.b16 %v220
    %v737 = vunpack.c.l.b16 %v221
    %v738 = vunpack.c.h.b16 %v221
    %v739 = vunpack.c.l.b16 %v222
    %v740 = vpack.c.b16 %v453, %v446
    %v741 = vpack.c.b16 %v454, %v447
    %v742 = vpack.c.b16 %v455, %v448
    %v743 = vpack.c.b16 %v456, %v449
    %v744 = vpack.c.b16 %v457, %v450
    %v745 = vpack.c.b16 %v458, %v451
    %v746 = vpack.c.b16 %v459, %v452
    %v747 = vpack.c.b16 %v467, %v460
    %v748 = vpack.c.b16 %v468, %v461
    %v749 = vpack.c.b16 %v469, %v462
    %v750 = vpack.c.b16 %v470, %v463
    %v751 = vpack.c.b16 %v471, %v464
    %v752 = vpack.c.b16 %v472, %v465
    %v753 = vpack.c.b16 %v473, %v466
    %v754 = vpack.c.b16 %v481, %v474
    %v755 = vpack.c.b16 %v482, %v475
    %v756 = vpack.c.b16 %v483, %v476
    %v757 = vpack.c.b16 %v484, %v477
    %v758 = vpack.c.b16 %v485, %v478
    %v759 = vpack.c.b16 %v486, %v479
    %v760 = vpack.c.b16 %v487, %v480
    %v761 = vpack.c.b16 %v495, %v488
    %v762 = vpack.c.b16 %v496, %v489
    %v763 = vpack.c.b16 %v497, %v490
    %v764 = vpack.c.b16 %v498, %v491
    %v765 = vpack.c.b16 %v499, %v492
    %v766 = vpack.c.b16 %v500, %v493
    %v767 = vpack.c.b16 %v501, %v494
    %v768 = vpack.c.b16 %v509, %v502
    %v769 = vpack.c.b16 %v510, %v503
    %v770 = vpack.c.b16 %v511, %v504
    %v771 = vpack.c.b16 %v512, %v505
    %v772 = vpack.c.b16 %v513, %v506
    %v773 = vpack.c.b16 %v514, %v507
    %v774 = vpack.c.b16 %v515, %v508
    %v775 = vpack.c.b16 %v523, %v516
    %v776 = vpack.c.b16 %v524, %v517
    %v777 = vpack.c.b16 %v525, %v518
    %v778 = vpack.c.b16 %v526, %v519
    %v779 = vpack.c.b16 %v527, %v520
    %v780 = vpack.c.b16 %v528, %v521
    %v781 = vpack.c.b16 %v529, %v522
    %v782 = vpack.c.b16 %v537, %v530
    %v783 = vpack.c.b16 %v538, %v531
    %v784 = vpack.c.b16 %v539, %v532
    %v785 = vpack.c.b16 %v540, %v533
    %v786 = vpack.c.b16 %v541, %v534
    %v787 = vpack.c.b16 %v542, %v535
    %v788 = vpack.c.b16 %v543, %v536
    %v789 = vpack.c.b16 %v551, %v544
    %v790 = vpack.c.b16 %v552, %v545
    %v791 = vpack.c.b16 %v553, %v546
    %v792 = vpack.c.b16 %v554, %v547
    %v793 = vpack.c.b16 %v555, %v548
    %v794 = vpack.c.b16 %v556, %v549
    %v795 = vpack.c.b16 %v557, %v550
    %v796 = vpack.c.b16 %v565, %v558
    %v797 = vpack.c.b16 %v566, %v559
    %v798 = vpack.c.b16 %v567, %v560
    %v799 = vpack.c.b16 %v568, %v561
    %v800 = vpack.c.b16 %v569, %v562
    %v801 = vpack.c.b16 %v570, %v563
    %v802 = vpack.c.b16 %v571, %v564
    %v803 = vpack.c.b16 %v579, %v572
    %v804 = vpack.c.b16 %v580, %v573
    %v805 = vpack.c.b16 %v581, %v574
    %v806 = vpack.c.b16 %v582, %v575
    %v807 = vpack.c.b16 %v583, %v576
    %v808 = vpack.c.b16 %v584, %v577
    %v809 = vpack.c.b16 %v585, %v578
    %v810 = vpack.c.b16 %v593, %v586
    %v811 = vpack.c.b16 %v594, %v587
    %v812 = vpack.c.b16 %v595, %v588
    %v813 = vpack.c.b16 %v596, %v589
    %v814 = vpack.c.b16 %v597, %v590
    %v815 = vpack.c.b16 %v598, %v591
    %v816 = vpack.c.b16 %v599, %v592
    %v817 = vpack.c.b16 %v607, %v600
    %v818 = vpack.c.b16 %v608, %v601
    %v819 = vpack.c.b16 %v609, %v602
    %v820 = vpack.c.b16 %v610, %v603
    %v821 = vpack.c.b16 %v611, %v604
    %v822 = vpack.c.b16 %v612, %v605
    %v823 = vpack.c.b16 %v613, %v606
    %v824 = vpack.c.b16 %v621, %v614
    %v825 = vpack.c.b16 %v622, %v615
    %v826 = vpack.c.b16 %v623, %v616
    %v827 = vpack.c.b16 %v624, %v617
    %v828 = vpack.c.b16 %v625, %v618
    %v829 = vpack.c.b16 %v626, %v619
    %v830 = vpack.c.b16 %v627, %v620
    %v831 = vpack.c.b16 %v635, %v628
    %v832 = vpack.c.b16 %v636, %v629
    %v833 = vpack.c.b16 %v637, %v630
    %v834 = vpack.c.b16 %v638, %v631
    %v835 = vpack.c.b16 %v639, %v632
    %v836 = vpack.c.b16 %v640, %v633
    %v837 = vpack.c.b16 %v641, %v634
    %v838 = vpack.c.b16 %v649, %v642
    %v839 = vpack.c.b16 %v650, %v643
    %v840 = vpack.c.b16 %v651, %v644
    %v841 = vpack.c.b16 %v652, %v645
    %v842 = vpack.c.b16 %v653, %v646
    %v843 = vpack.c.b16 %v654, %v647
    %v844 = vpack.c.b16 %v655, %v648
    %v845 = vpack.c.b16 %v663, %v656
    %v846 = vpack.c.b16 %v664, %v657
    %v847 = vpack.c.b16 %v665, %v658
    %v848 = vpack.c.b16 %v666, %v659
    %v849 = vpack.c.b16 %v667, %v660
    %v850 = vpack.c.b16 %v668, %v661
    %v851 = vpack.c.b16 %v669, %v662
    %v852 = vpack.c.b16 %v677, %v670
    %v853 = vpack.c.b16 %v678, %v671
    %v854 = vpack.c.b16 %v679, %v672
    %v855 = vpack.c.b16 %v680, %v673
    %v856 = vpack.c.b16 %v681, %v674
    %v857 = vpack.c.b16 %v682, %v675
    %v858 = vpack.c.b16 %v683, %v676
    %v859 = vpack.c.b16 %v691, %v684
    %v860 = vpack.c.b16 %v692, %v685
    %v861 = vpack.c.b16 %v693, %v686
    %v862 = vpack.c.b16 %v694, %v687
    %v863 = vpack.c.b16 %v695, %v688
    %v864 = vpack.c.b16 %v696, %v689
    %v865 = vpack.c.b16 %v697, %v690
    %v866 = vpack.c.b16 %v705, %v698
    %v867 = vpack.c.b16 %v706, %v699
    %v868 = vpack.c.b16 %v707, %v700
    %v869 = vpack.c.b16 %v708, %v701
    %v870 = vpack.c.b16 %v709, %v702
    %v871 = vpack.c.b16 %v710, %v703
    %v872 = vpack.c.b16 %v711, %v704
    %v873 = vpack.c.b16 %v719, %v712
    %v874 = vpack.c.b16 %v720, %v713
    %v875 = vpack.c.b16 %v721, %v714
    %v876 = vpack.c.b16 %v722, %v715
    %v877 = vpack.c.b16 %v723, %v716
    %v878 = vpack.c.b16 %v724, %v717
    %v879 = vpack.c.b16 %v725, %v718
    %v880 = vpack.c.b16 %v733, %v726
    %v881 = vpack.c.b16 %v734, %v727
    %v882 = vpack.c.b16 %v735, %v728
    %v883 = vpack.c.b16 %v736, %v729
    %v884 = vpack.c.b16 %v737, %v730
    %v885 = vpack.c.b16 %v738, %v731
    %v886 = vpack.c.b16 %v739, %v732
    %vm1034 = vcmask 654336
    %v1036 = vsel %vm1034, %v260, 0
    %v1039 = vsel %vm1034, %v263, 0
    %v1042 = vsel %vm1034, %v266, 0
    %v1045 = vsel %vm1034, %v269, 0
    %1047 = vmatprep.subr.bf16.mxu0 %v741
    %1048 = vmatpush1.bf16.msra.mxu0 %v740
    %1049 = vmatprep.subr.bf16.mxu0 %v748
    %1050 = vmatpush1.bf16.msra.mxu0 %v747
    %1051 = vmatprep.subr.bf16.mxu0 %v755
    %1052 = vmatpush1.bf16.msra.mxu0 %v754
    %1053 = vmatprep.subr.bf16.mxu0 %v762
    %1054 = vmatpush1.bf16.msra.mxu0 %v761
    %1055 = vmatprep.subr.bf16.mxu0 %v769
    %1056 = vmatpush1.bf16.msra.mxu0 %v768
    %1057 = vmatprep.subr.bf16.mxu0 %v776
    %1058 = vmatpush1.bf16.msra.mxu0 %v775
    %1059 = vmatprep.subr.bf16.mxu0 %v783
    %1060 = vmatpush1.bf16.msra.mxu0 %v782
    %1061 = vmatprep.subr.bf16.mxu0 %v790
    %1062 = vmatpush1.bf16.msra.mxu0 %v789
    %1063 = vmatprep.subr.bf16.mxu0 %v797
    %1064 = vmatpush1.bf16.msra.mxu0 %v796
    %1065 = vmatprep.subr.bf16.mxu0 %v804
    %1066 = vmatpush1.bf16.msra.mxu0 %v803
    %1067 = vmatprep.subr.bf16.mxu0 %v811
    %1068 = vmatpush1.bf16.msra.mxu0 %v810
    %1069 = vmatprep.subr.bf16.mxu0 %v818
    %1070 = vmatpush1.bf16.msra.mxu0 %v817
    %1071 = vmatprep.subr.bf16.mxu0 %v825
    %1072 = vmatpush1.bf16.msra.mxu0 %v824
    %1073 = vmatprep.subr.bf16.mxu0 %v832
    %1074 = vmatpush1.bf16.msra.mxu0 %v831
    %1075 = vmatprep.subr.bf16.mxu0 %v839
    %1076 = vmatpush1.bf16.msra.mxu0 %v838
    %1077 = vmatprep.subr.bf16.mxu0 %v846
    %1078 = vmatpush1.bf16.msra.mxu0 %v845
    %1079 = vmatprep.mubr.bf16.mxu0 %v259
    %1080 = vmatmul.mubr.bf16.gmra.mrb[0].mxu0 %v258
    %v1081 = vpop.f32.mrb[0].mxu0
    %v1082 = vadd.f32 0.0, %v1081
    %v1083 = vpop.f32.mrb[0].mxu0
    %v1084 = vadd.f32 0.0, %v1083
    %v1085 = vpop.f32.mrb[0].mxu0
    %v1086 = vadd.f32 0.0, %v1085
    %v1087 = vpop.f32.mrb[0].mxu0
    %v1088 = vadd.f32 0.0, %v1087
    %1089 = vmatprep.mubr.bf16.mxu0 %v262
    %1090 = vmatmul.mubr.bf16.gmra.mrb[0].mxu0 %v261
    %v1091 = vpop.f32.mrb[0].mxu0
    %v1092 = vadd.f32 0.0, %v1091
    %v1093 = vpop.f32.mrb[0].mxu0
    %v1094 = vadd.f32 0.0, %v1093
    %v1095 = vpop.f32.mrb[0].mxu0
    %v1096 = vadd.f32 0.0, %v1095
    %v1097 = vpop.f32.mrb[0].mxu0
    %v1098 = vadd.f32 0.0, %v1097
    %1099 = vmatprep.mubr.bf16.mxu0 %v265
    %1100 = vmatmul.mubr.bf16.gmra.mrb[0].mxu0 %v264
    %v1101 = vpop.f32.mrb[0].mxu0
    %v1102 = vadd.f32 0.0, %v1101
    %v1103 = vpop.f32.mrb[0].mxu0
    %v1104 = vadd.f32 0.0, %v1103
    %v1105 = vpop.f32.mrb[0].mxu0
    %v1106 = vadd.f32 0.0, %v1105
    %v1107 = vpop.f32.mrb[0].mxu0
    %v1108 = vadd.f32 0.0, %v1107
    %1109 = vmatprep.mubr.bf16.mxu0 %v268
    %1110 = vmatmul.mubr.bf16.gmra.mrb[0].mxu0 %v267
    %v1111 = vpop.f32.mrb[0].mxu0
    %v1112 = vadd.f32 0.0, %v1111
    %v1113 = vpop.f32.mrb[0].mxu0
    %v1114 = vadd.f32 0.0, %v1113
    %v1115 = vpop.f32.mrb[0].mxu0
    %v1116 = vpop.f32.mrb[0].mxu0
    %1117 = vdwg.mxu0
    %1118 = vmatprep.subr.bf16.mxu0 %v853
    %1119 = vmatpush1.bf16.msra.mxu0 %v852
    %1120 = vmatprep.subr.bf16.mxu0 %v860
    %1121 = vmatpush1.bf16.msra.mxu0 %v859
    %1122 = vmatprep.subr.bf16.mxu0 %v867
    %1123 = vmatpush1.bf16.msra.mxu0 %v866
    %1124 = vmatprep.subr.bf16.mxu0 %v874
    %1125 = vmatpush1.bf16.msra.mxu0 %v873
    %1126 = vmatprep.subr.bf16.mxu0 %v881
    %1127 = vmatpush1.bf16.msra.mxu0 %v880
    %1128 = vmatprep.subr.bf16.mxu0 0
    %1129 = vmatpush1.bf16.msra.mxu0 0
    %1130 = vmatprep.subr.bf16.mxu0 0
    %1131 = vmatpush1.bf16.msra.mxu0 0
    %1132 = vmatprep.subr.bf16.mxu0 0
    %1133 = vmatpush1.bf16.msra.mxu0 0
    %1134 = vmatprep.subr.bf16.mxu0 0
    %1135 = vmatpush1.bf16.msra.mxu0 0
    %1136 = vmatprep.subr.bf16.mxu0 0
    %1137 = vmatpush1.bf16.msra.mxu0 0
    %1138 = vmatprep.subr.bf16.mxu0 0
    %1139 = vmatpush1.bf16.msra.mxu0 0
    %1140 = vmatprep.subr.bf16.mxu0 0
    %1141 = vmatpush1.bf16.msra.mxu0 0
    %1142 = vmatprep.subr.bf16.mxu0 0
    %1143 = vmatpush1.bf16.msra.mxu0 0
    %1144 = vmatprep.subr.bf16.mxu0 0
    %1145 = vmatpush1.bf16.msra.mxu0 0
    %1146 = vmatprep.subr.bf16.mxu0 0
    %1147 = vmatpush1.bf16.msra.mxu0 0
    %1148 = vmatprep.subr.bf16.mxu0 0
    %1149 = vmatpush1.bf16.msra.mxu0 0
    %1150 = vmatprep.mubr.bf16.mxu0 0
    %1151 = vmatmul.mubr.bf16.gmra.mrb[0].mxu0 %v1036
    %v1152 = vpop.f32.mrb[0].mxu0
    %v1153 = vadd.f32 %v1082, %v1152
    %v1154 = vpop.f32.mrb[0].mxu0
    %v1155 = vadd.f32 %v1084, %v1154
    %v1156 = vpop.f32.mrb[0].mxu0
    %v1157 = vadd.f32 %v1086, %v1156
    %v1158 = vpop.f32.mrb[0].mxu0
    %v1159 = vadd.f32 %v1088, %v1158
    %1160 = vmatprep.mubr.bf16.mxu0 0
    %1161 = vmatmul.mubr.bf16.gmra.mrb[0].mxu0 %v1039
    %v1162 = vpop.f32.mrb[0].mxu0
    %v1163 = vadd.f32 %v1092, %v1162
    %v1164 = vpop.f32.mrb[0].mxu0
    %v1165 = vadd.f32 %v1094, %v1164
    %v1166 = vpop.f32.mrb[0].mxu0
    %v1167 = vadd.f32 %v1096, %v1166
    %v1168 = vpop.f32.mrb[0].mxu0
    %v1169 = vadd.f32 %v1098, %v1168
    %1170 = vmatprep.mubr.bf16.mxu0 0
    %1171 = vmatmul.mubr.bf16.gmra.mrb[0].mxu0 %v1042
    %v1172 = vpop.f32.mrb[0].mxu0
    %v1173 = vadd.f32 %v1102, %v1172
    %v1174 = vpop.f32.mrb[0].mxu0
    %v1175 = vadd.f32 %v1104, %v1174
    %v1176 = vpop.f32.mrb[0].mxu0
    %v1177 = vadd.f32 %v1106, %v1176
    %v1178 = vpop.f32.mrb[0].mxu0
    %v1179 = vadd.f32 %v1108, %v1178
    %1180 = vmatprep.mubr.bf16.mxu0 0
    %1181 = vmatmul.mubr.bf16.gmra.mrb[0].mxu0 %v1045
    %v1182 = vpop.f32.mrb[0].mxu0
    %v1183 = vadd.f32 %v1112, %v1182
    %v1184 = vpop.f32.mrb[0].mxu0
    %v1185 = vadd.f32 %v1114, %v1184
    %v1186 = vpop.f32.mrb[0].mxu0
    %v1187 = vpop.f32.mrb[0].mxu0
    %1188 = vdwg.mxu0
    %1189 = vmatprep.subr.bf16.mxu0 %v743
    %1190 = vmatpush1.bf16.msra.mxu0 %v742
    %1191 = vmatprep.subr.bf16.mxu0 %v750
    %1192 = vmatpush1.bf16.msra.mxu0 %v749
    %1193 = vmatprep.subr.bf16.mxu0 %v757
    %1194 = vmatpush1.bf16.msra.mxu0 %v756
    %1195 = vmatprep.subr.bf16.mxu0 %v764
    %1196 = vmatpush1.bf16.msra.mxu0 %v763
    %1197 = vmatprep.subr.bf16.mxu0 %v771
    %1198 = vmatpush1.bf16.msra.mxu0 %v770
    %1199 = vmatprep.subr.bf16.mxu0 %v778
    %1200 = vmatpush1.bf16.msra.mxu0 %v777
    %1201 = vmatprep.subr.bf16.mxu0 %v785
    %1202 = vmatpush1.bf16.msra.mxu0 %v784
    %1203 = vmatprep.subr.bf16.mxu0 %v792
    %1204 = vmatpush1.bf16.msra.mxu0 %v791
    %1205 = vmatprep.subr.bf16.mxu0 %v799
    %1206 = vmatpush1.bf16.msra.mxu0 %v798
    %1207 = vmatprep.subr.bf16.mxu0 %v806
    %1208 = vmatpush1.bf16.msra.mxu0 %v805
    %1209 = vmatprep.subr.bf16.mxu0 %v813
    %1210 = vmatpush1.bf16.msra.mxu0 %v812
    %1211 = vmatprep.subr.bf16.mxu0 %v820
    %1212 = vmatpush1.bf16.msra.mxu0 %v819
    %1213 = vmatprep.subr.bf16.mxu0 %v827
    %1214 = vmatpush1.bf16.msra.mxu0 %v826
    %1215 = vmatprep.subr.bf16.mxu0 %v834
    %1216 = vmatpush1.bf16.msra.mxu0 %v833
    %1217 = vmatprep.subr.bf16.mxu0 %v841
    %1218 = vmatpush1.bf16.msra.mxu0 %v840
    %1219 = vmatprep.subr.bf16.mxu0 %v848
    %1220 = vmatpush1.bf16.msra.mxu0 %v847
    %1221 = vmatprep.mubr.bf16.mxu0 %v259
    %1222 = vmatmul.mubr.bf16.gmra.mrb[0].mxu0 %v258
    %v1223 = vpop.f32.mrb[0].mxu0
    %v1224 = vadd.f32 0.0, %v1223
    %v1225 = vpop.f32.mrb[0].mxu0
    %v1226 = vadd.f32 0.0, %v1225
    %v1227 = vpop.f32.mrb[0].mxu0
    %v1228 = vadd.f32 0.0, %v1227
    %v1229 = vpop.f32.mrb[0].mxu0
    %v1230 = vadd.f32 0.0, %v1229
    %1231 = vmatprep.mubr.bf16.mxu0 %v262
    %1232 = vmatmul.mubr.bf16.gmra.mrb[0].mxu0 %v261
    %v1233 = vpop.f32.mrb[0].mxu0
    %v1234 = vadd.f32 0.0, %v1233
    %v1235 = vpop.f32.mrb[0].mxu0
    %v1236 = vadd.f32 0.0, %v1235
    %v1237 = vpop.f32.mrb[0].mxu0
    %v1238 = vadd.f32 0.0, %v1237
    %v1239 = vpop.f32.mrb[0].mxu0
    %v1240 = vadd.f32 0.0, %v1239
    %1241 = vmatprep.mubr.bf16.mxu0 %v265
    %1242 = vmatmul.mubr.bf16.gmra.mrb[0].mxu0 %v264
    %v1243 = vpop.f32.mrb[0].mxu0
    %v1244 = vadd.f32 0.0, %v1243
    %v1245 = vpop.f32.mrb[0].mxu0
    %v1246 = vadd.f32 0.0, %v1245
    %v1247 = vpop.f32.mrb[0].mxu0
    %v1248 = vadd.f32 0.0, %v1247
    %v1249 = vpop.f32.mrb[0].mxu0
    %v1250 = vadd.f32 0.0, %v1249
    %1251 = vmatprep.mubr.bf16.mxu0 %v268
    %1252 = vmatmul.mubr.bf16.gmra.mrb[0].mxu0 %v267
    %v1253 = vpop.f32.mrb[0].mxu0
    %v1254 = vadd.f32 0.0, %v1253
    %v1255 = vpop.f32.mrb[0].mxu0
    %v1256 = vadd.f32 0.0, %v1255
    %v1257 = vpop.f32.mrb[0].mxu0
    %v1258 = vpop.f32.mrb[0].mxu0
    %1259 = vdwg.mxu0
    %1260 = vmatprep.subr.bf16.mxu0 %v855
    %1261 = vmatpush1.bf16.msra.mxu0 %v854
    %1262 = vmatprep.subr.bf16.mxu0 %v862
    %1263 = vmatpush1.bf16.msra.mxu0 %v861
    %1264 = vmatprep.subr.bf16.mxu0 %v869
    %1265 = vmatpush1.bf16.msra.mxu0 %v868
    %1266 = vmatprep.subr.bf16.mxu0 %v876
    %1267 = vmatpush1.bf16.msra.mxu0 %v875
    %1268 = vmatprep.subr.bf16.mxu0 %v883
    %1269 = vmatpush1.bf16.msra.mxu0 %v882
    %1270 = vmatprep.subr.bf16.mxu0 0
    %1271 = vmatpush1.bf16.msra.mxu0 0
    %1272 = vmatprep.subr.bf16.mxu0 0
    %1273 = vmatpush1.bf16.msra.mxu0 0
    %1274 = vmatprep.subr.bf16.mxu0 0
    %1275 = vmatpush1.bf16.msra.mxu0 0
    %1276 = vmatprep.subr.bf16.mxu0 0
    %1277 = vmatpush1.bf16.msra.mxu0 0
    %1278 = vmatprep.subr.bf16.mxu0 0
    %1279 = vmatpush1.bf16.msra.mxu0 0
    %1280 = vmatprep.subr.bf16.mxu0 0
    %1281 = vmatpush1.bf16.msra.mxu0 0
    %1282 = vmatprep.subr.bf16.mxu0 0
    %1283 = vmatpush1.bf16.msra.mxu0 0
    %1284 = vmatprep.subr.bf16.mxu0 0
    %1285 = vmatpush1.bf16.msra.mxu0 0
    %1286 = vmatprep.subr.bf16.mxu0 0
    %1287 = vmatpush1.bf16.msra.mxu0 0
    %1288 = vmatprep.subr.bf16.mxu0 0
    %1289 = vmatpush1.bf16.msra.mxu0 0
    %1290 = vmatprep.subr.bf16.mxu0 0
    %1291 = vmatpush1.bf16.msra.mxu0 0
    %1292 = vmatprep.mubr.bf16.mxu0 0
    %1293 = vmatmul.mubr.bf16.gmra.mrb[0].mxu0 %v1036
    %v1294 = vpop.f32.mrb[0].mxu0
    %v1295 = vadd.f32 %v1224, %v1294
    %v1296 = vpop.f32.mrb[0].mxu0
    %v1297 = vadd.f32 %v1226, %v1296
    %v1298 = vpop.f32.mrb[0].mxu0
    %v1299 = vadd.f32 %v1228, %v1298
    %v1300 = vpop.f32.mrb[0].mxu0
    %v1301 = vadd.f32 %v1230, %v1300
    %1302 = vmatprep.mubr.bf16.mxu0 0
    %1303 = vmatmul.mubr.bf16.gmra.mrb[0].mxu0 %v1039
    %v1304 = vpop.f32.mrb[0].mxu0
    %v1305 = vadd.f32 %v1234, %v1304
    %v1306 = vpop.f32.mrb[0].mxu0
    %v1307 = vadd.f32 %v1236, %v1306
    %v1308 = vpop.f32.mrb[0].mxu0
    %v1309 = vadd.f32 %v1238, %v1308
    %v1310 = vpop.f32.mrb[0].mxu0
    %v1311 = vadd.f32 %v1240, %v1310
    %1312 = vmatprep.mubr.bf16.mxu0 0
    %1313 = vmatmul.mubr.bf16.gmra.mrb[0].mxu0 %v1042
    %v1314 = vpop.f32.mrb[0].mxu0
    %v1315 = vadd.f32 %v1244, %v1314
    %v1316 = vpop.f32.mrb[0].mxu0
    %v1317 = vadd.f32 %v1246, %v1316
    %v1318 = vpop.f32.mrb[0].mxu0
    %v1319 = vadd.f32 %v1248, %v1318
    %v1320 = vpop.f32.mrb[0].mxu0
    %v1321 = vadd.f32 %v1250, %v1320
    %1322 = vmatprep.mubr.bf16.mxu0 0
    %1323 = vmatmul.mubr.bf16.gmra.mrb[0].mxu0 %v1045
    %v1324 = vpop.f32.mrb[0].mxu0
    %v1325 = vadd.f32 %v1254, %v1324
    %v1326 = vpop.f32.mrb[0].mxu0
    %v1327 = vadd.f32 %v1256, %v1326
    %v1328 = vpop.f32.mrb[0].mxu0
    %v1329 = vpop.f32.mrb[0].mxu0
    %1330 = vdwg.mxu0
    %1331 = vmatprep.subr.bf16.mxu0 %v745
    %1332 = vmatpush1.bf16.msra.mxu0 %v744
    %1333 = vmatprep.subr.bf16.mxu0 %v752
    %1334 = vmatpush1.bf16.msra.mxu0 %v751
    %1335 = vmatprep.subr.bf16.mxu0 %v759
    %1336 = vmatpush1.bf16.msra.mxu0 %v758
    %1337 = vmatprep.subr.bf16.mxu0 %v766
    %1338 = vmatpush1.bf16.msra.mxu0 %v765
    %1339 = vmatprep.subr.bf16.mxu0 %v773
    %1340 = vmatpush1.bf16.msra.mxu0 %v772
    %1341 = vmatprep.subr.bf16.mxu0 %v780
    %1342 = vmatpush1.bf16.msra.mxu0 %v779
    %1343 = vmatprep.subr.bf16.mxu0 %v787
    %1344 = vmatpush1.bf16.msra.mxu0 %v786
    %1345 = vmatprep.subr.bf16.mxu0 %v794
    %1346 = vmatpush1.bf16.msra.mxu0 %v793
    %1347 = vmatprep.subr.bf16.mxu0 %v801
    %1348 = vmatpush1.bf16.msra.mxu0 %v800
    %1349 = vmatprep.subr.bf16.mxu0 %v808
    %1350 = vmatpush1.bf16.msra.mxu0 %v807
    %1351 = vmatprep.subr.bf16.mxu0 %v815
    %1352 = vmatpush1.bf16.msra.mxu0 %v814
    %1353 = vmatprep.subr.bf16.mxu0 %v822
    %1354 = vmatpush1.bf16.msra.mxu0 %v821
    %1355 = vmatprep.subr.bf16.mxu0 %v829
    %1356 = vmatpush1.bf16.msra.mxu0 %v828
    %1357 = vmatprep.subr.bf16.mxu0 %v836
    %1358 = vmatpush1.bf16.msra.mxu0 %v835
    %1359 = vmatprep.subr.bf16.mxu0 %v843
    %1360 = vmatpush1.bf16.msra.mxu0 %v842
    %1361 = vmatprep.subr.bf16.mxu0 %v850
    %1362 = vmatpush1.bf16.msra.mxu0 %v849
    %1363 = vmatprep.mubr.bf16.mxu0 %v259
    %1364 = vmatmul.mubr.bf16.gmra.mrb[0].mxu0 %v258
    %v1365 = vpop.f32.mrb[0].mxu0
    %v1366 = vadd.f32 0.0, %v1365
    %v1367 = vpop.f32.mrb[0].mxu0
    %v1368 = vadd.f32 0.0, %v1367
    %v1369 = vpop.f32.mrb[0].mxu0
    %v1370 = vadd.f32 0.0, %v1369
    %v1371 = vpop.f32.mrb[0].mxu0
    %v1372 = vadd.f32 0.0, %v1371
    %1373 = vmatprep.mubr.bf16.mxu0 %v262
    %1374 = vmatmul.mubr.bf16.gmra.mrb[0].mxu0 %v261
    %v1375 = vpop.f32.mrb[0].mxu0
    %v1376 = vadd.f32 0.0, %v1375
    %v1377 = vpop.f32.mrb[0].mxu0
    %v1378 = vadd.f32 0.0, %v1377
    %v1379 = vpop.f32.mrb[0].mxu0
    %v1380 = vadd.f32 0.0, %v1379
    %v1381 = vpop.f32.mrb[0].mxu0
    %v1382 = vadd.f32 0.0, %v1381
    %1383 = vmatprep.mubr.bf16.mxu0 %v265
    %1384 = vmatmul.mubr.bf16.gmra.mrb[0].mxu0 %v264
    %v1385 = vpop.f32.mrb[0].mxu0
    %v1386 = vadd.f32 0.0, %v1385
    %v1387 = vpop.f32.mrb[0].mxu0
    %v1388 = vadd.f32 0.0, %v1387
    %v1389 = vpop.f32.mrb[0].mxu0
    %v1390 = vadd.f32 0.0, %v1389
    %v1391 = vpop.f32.mrb[0].mxu0
    %v1392 = vadd.f32 0.0, %v1391
    %1393 = vmatprep.mubr.bf16.mxu0 %v268
    %1394 = vmatmul.mubr.bf16.gmra.mrb[0].mxu0 %v267
    %v1395 = vpop.f32.mrb[0].mxu0
    %v1396 = vadd.f32 0.0, %v1395
    %v1397 = vpop.f32.mrb[0].mxu0
    %v1398 = vadd.f32 0.0, %v1397
    %v1399 = vpop.f32.mrb[0].mxu0
    %v1400 = vpop.f32.mrb[0].mxu0
    %1401 = vdwg.mxu0
    %1402 = vmatprep.subr.bf16.mxu0 %v857
    %1403 = vmatpush1.bf16.msra.mxu0 %v856
    %1404 = vmatprep.subr.bf16.mxu0 %v864
    %1405 = vmatpush1.bf16.msra.mxu0 %v863
    %1406 = vmatprep.subr.bf16.mxu0 %v871
    %1407 = vmatpush1.bf16.msra.mxu0 %v870
    %1408 = vmatprep.subr.bf16.mxu0 %v878
    %1409 = vmatpush1.bf16.msra.mxu0 %v877
    %1410 = vmatprep.subr.bf16.mxu0 %v885
    %1411 = vmatpush1.bf16.msra.mxu0 %v884
    %1412 = vmatprep.subr.bf16.mxu0 0
    %1413 = vmatpush1.bf16.msra.mxu0 0
    %1414 = vmatprep.subr.bf16.mxu0 0
    %1415 = vmatpush1.bf16.msra.mxu0 0
    %1416 = vmatprep.subr.bf16.mxu0 0
    %1417 = vmatpush1.bf16.msra.mxu0 0
    %1418 = vmatprep.subr.bf16.mxu0 0
    %1419 = vmatpush1.bf16.msra.mxu0 0
    %1420 = vmatprep.subr.bf16.mxu0 0
    %1421 = vmatpush1.bf16.msra.mxu0 0
    %1422 = vmatprep.subr.bf16.mxu0 0
    %1423 = vmatpush1.bf16.msra.mxu0 0
    %1424 = vmatprep.subr.bf16.mxu0 0
    %1425 = vmatpush1.bf16.msra.mxu0 0
    %1426 = vmatprep.subr.bf16.mxu0 0
    %1427 = vmatpush1.bf16.msra.mxu0 0
    %1428 = vmatprep.subr.bf16.mxu0 0
    %1429 = vmatpush1.bf16.msra.mxu0 0
    %1430 = vmatprep.subr.bf16.mxu0 0
    %1431 = vmatpush1.bf16.msra.mxu0 0
    %1432 = vmatprep.subr.bf16.mxu0 0
    %1433 = vmatpush1.bf16.msra.mxu0 0
    %1434 = vmatprep.mubr.bf16.mxu0 0
    %1435 = vmatmul.mubr.bf16.gmra.mrb[0].mxu0 %v1036
    %v1436 = vpop.f32.mrb[0].mxu0
    %v1437 = vadd.f32 %v1366, %v1436
    %v1438 = vpop.f32.mrb[0].mxu0
    %v1439 = vadd.f32 %v1368, %v1438
    %v1440 = vpop.f32.mrb[0].mxu0
    %v1441 = vadd.f32 %v1370, %v1440
    %v1442 = vpop.f32.mrb[0].mxu0
    %v1443 = vadd.f32 %v1372, %v1442
    %1444 = vmatprep.mubr.bf16.mxu0 0
    %1445 = vmatmul.mubr.bf16.gmra.mrb[0].mxu0 %v1039
    %v1446 = vpop.f32.mrb[0].mxu0
    %v1447 = vadd.f32 %v1376, %v1446
    %v1448 = vpop.f32.mrb[0].mxu0
    %v1449 = vadd.f32 %v1378, %v1448
    %v1450 = vpop.f32.mrb[0].mxu0
    %v1451 = vadd.f32 %v1380, %v1450
    %v1452 = vpop.f32.mrb[0].mxu0
    %v1453 = vadd.f32 %v1382, %v1452
    %1454 = vmatprep.mubr.bf16.mxu0 0
    %1455 = vmatmul.mubr.bf16.gmra.mrb[0].mxu0 %v1042
    %v1456 = vpop.f32.mrb[0].mxu0
    %v1457 = vadd.f32 %v1386, %v1456
    %v1458 = vpop.f32.mrb[0].mxu0
    %v1459 = vadd.f32 %v1388, %v1458
    %v1460 = vpop.f32.mrb[0].mxu0
    %v1461 = vadd.f32 %v1390, %v1460
    %v1462 = vpop.f32.mrb[0].mxu0
    %v1463 = vadd.f32 %v1392, %v1462
    %1464 = vmatprep.mubr.bf16.mxu0 0
    %1465 = vmatmul.mubr.bf16.gmra.mrb[0].mxu0 %v1045
    %v1466 = vpop.f32.mrb[0].mxu0
    %v1467 = vadd.f32 %v1396, %v1466
    %v1468 = vpop.f32.mrb[0].mxu0
    %v1469 = vadd.f32 %v1398, %v1468
    %v1470 = vpop.f32.mrb[0].mxu0
    %v1471 = vpop.f32.mrb[0].mxu0
    %1472 = vdwg.mxu0
    %1473 = vmatprep.subr.bf16.mxu0 0
    %1474 = vmatpush1.bf16.msra.mxu0 %v746
    %1475 = vmatprep.subr.bf16.mxu0 0
    %1476 = vmatpush1.bf16.msra.mxu0 %v753
    %1477 = vmatprep.subr.bf16.mxu0 0
    %1478 = vmatpush1.bf16.msra.mxu0 %v760
    %1479 = vmatprep.subr.bf16.mxu0 0
    %1480 = vmatpush1.bf16.msra.mxu0 %v767
    %1481 = vmatprep.subr.bf16.mxu0 0
    %1482 = vmatpush1.bf16.msra.mxu0 %v774
    %1483 = vmatprep.subr.bf16.mxu0 0
    %1484 = vmatpush1.bf16.msra.mxu0 %v781
    %1485 = vmatprep.subr.bf16.mxu0 0
    %1486 = vmatpush1.bf16.msra.mxu0 %v788
    %1487 = vmatprep.subr.bf16.mxu0 0
    %1488 = vmatpush1.bf16.msra.mxu0 %v795
    %1489 = vmatprep.subr.bf16.mxu0 0
    %1490 = vmatpush1.bf16.msra.mxu0 %v802
    %1491 = vmatprep.subr.bf16.mxu0 0
    %1492 = vmatpush1.bf16.msra.mxu0 %v809
    %1493 = vmatprep.subr.bf16.mxu0 0
    %1494 = vmatpush1.bf16.msra.mxu0 %v816
    %1495 = vmatprep.subr.bf16.mxu0 0
    %1496 = vmatpush1.bf16.msra.mxu0 %v823
    %1497 = vmatprep.subr.bf16.mxu0 0
    %1498 = vmatpush1.bf16.msra.mxu0 %v830
    %1499 = vmatprep.subr.bf16.mxu0 0
    %1500 = vmatpush1.bf16.msra.mxu0 %v837
    %1501 = vmatprep.subr.bf16.mxu0 0
    %1502 = vmatpush1.bf16.msra.mxu0 %v844
    %1503 = vmatprep.subr.bf16.mxu0 0
    %1504 = vmatpush1.bf16.msra.mxu0 %v851
    %1505 = vmatprep.mubr.bf16.mxu0 %v259
    %1506 = vmatmul.mubr.bf16.gmra.mrb[0].mxu0 %v258
    %v1507 = vpop.f32.mrb[0].mxu0
    %v1508 = vadd.f32 0.0, %v1507
    %v1509 = vpop.f32.mrb[0].mxu0
    %v1510 = vpop.f32.mrb[0].mxu0
    %v1511 = vadd.f32 0.0, %v1510
    %v1512 = vpop.f32.mrb[0].mxu0
    %1513 = vmatprep.mubr.bf16.mxu0 %v262
    %1514 = vmatmul.mubr.bf16.gmra.mrb[0].mxu0 %v261
    %v1515 = vpop.f32.mrb[0].mxu0
    %v1516 = vadd.f32 0.0, %v1515
    %v1517 = vpop.f32.mrb[0].mxu0
    %v1518 = vpop.f32.mrb[0].mxu0
    %v1519 = vadd.f32 0.0, %v1518
    %v1520 = vpop.f32.mrb[0].mxu0
    %1521 = vmatprep.mubr.bf16.mxu0 %v265
    %1522 = vmatmul.mubr.bf16.gmra.mrb[0].mxu0 %v264
    %v1523 = vpop.f32.mrb[0].mxu0
    %v1524 = vadd.f32 0.0, %v1523
    %v1525 = vpop.f32.mrb[0].mxu0
    %v1526 = vpop.f32.mrb[0].mxu0
    %v1527 = vadd.f32 0.0, %v1526
    %v1528 = vpop.f32.mrb[0].mxu0
    %1529 = vmatprep.mubr.bf16.mxu0 %v268
    %1530 = vmatmul.mubr.bf16.gmra.mrb[0].mxu0 %v267
    %v1531 = vpop.f32.mrb[0].mxu0
    %v1532 = vadd.f32 0.0, %v1531
    %v1533 = vpop.f32.mrb[0].mxu0
    %v1534 = vpop.f32.mrb[0].mxu0
    %v1535 = vpop.f32.mrb[0].mxu0
    %1536 = vdwg.mxu0
    %1537 = vmatprep.subr.bf16.mxu0 0
    %1538 = vmatpush1.bf16.msra.mxu0 %v858
    %1539 = vmatprep.subr.bf16.mxu0 0
    %1540 = vmatpush1.bf16.msra.mxu0 %v865
    %1541 = vmatprep.subr.bf16.mxu0 0
    %1542 = vmatpush1.bf16.msra.mxu0 %v872
    %1543 = vmatprep.subr.bf16.mxu0 0
    %1544 = vmatpush1.bf16.msra.mxu0 %v879
    %1545 = vmatprep.subr.bf16.mxu0 0
    %1546 = vmatpush1.bf16.msra.mxu0 %v886
    %1547 = vmatprep.subr.bf16.mxu0 0
    %1548 = vmatpush1.bf16.msra.mxu0 0
    %1549 = vmatprep.subr.bf16.mxu0 0
    %1550 = vmatpush1.bf16.msra.mxu0 0
    %1551 = vmatprep.subr.bf16.mxu0 0
    %1552 = vmatpush1.bf16.msra.mxu0 0
    %1553 = vmatprep.subr.bf16.mxu0 0
    %1554 = vmatpush1.bf16.msra.mxu0 0
    %1555 = vmatprep.subr.bf16.mxu0 0
    %1556 = vmatpush1.bf16.msra.mxu0 0
    %1557 = vmatprep.subr.bf16.mxu0 0
    %1558 = vmatpush1.bf16.msra.mxu0 0
    %1559 = vmatprep.subr.bf16.mxu0 0
    %1560 = vmatpush1.bf16.msra.mxu0 0
    %1561 = vmatprep.subr.bf16.mxu0 0
    %1562 = vmatpush1.bf16.msra.mxu0 0
    %1563 = vmatprep.subr.bf16.mxu0 0
    %1564 = vmatpush1.bf16.msra.mxu0 0
    %1565 = vmatprep.subr.bf16.mxu0 0
    %1566 = vmatpush1.bf16.msra.mxu0 0
    %1567 = vmatprep.subr.bf16.mxu0 0
    %1568 = vmatpush1.bf16.msra.mxu0 0
    %1569 = vmatprep.mubr.bf16.mxu0 0
    %1570 = vmatmul.mubr.bf16.gmra.mrb[0].mxu0 %v1036
    %v1571 = vpop.f32.mrb[0].mxu0
    %v1572 = vadd.f32 %v1508, %v1571
    %v1573 = vpop.f32.mrb[0].mxu0
    %v1574 = vpop.f32.mrb[0].mxu0
    %v1575 = vadd.f32 %v1511, %v1574
    %v1576 = vpop.f32.mrb[0].mxu0
    %1577 = vmatprep.mubr.bf16.mxu0 0
    %1578 = vmatmul.mubr.bf16.gmra.mrb[0].mxu0 %v1039
    %v1579 = vpop.f32.mrb[0].mxu0
    %v1580 = vadd.f32 %v1516, %v1579
    %v1581 = vpop.f32.mrb[0].mxu0
    %v1582 = vpop.f32.mrb[0].mxu0
    %v1583 = vadd.f32 %v1519, %v1582
    %v1584 = vpop.f32.mrb[0].mxu0
    %1585 = vmatprep.mubr.bf16.mxu0 0
    %1586 = vmatmul.mubr.bf16.gmra.mrb[0].mxu0 %v1042
    %v1587 = vpop.f32.mrb[0].mxu0
    %v1588 = vadd.f32 %v1524, %v1587
    %v1589 = vpop.f32.mrb[0].mxu0
    %v1590 = vpop.f32.mrb[0].mxu0
    %v1591 = vadd.f32 %v1527, %v1590
    %v1592 = vpop.f32.mrb[0].mxu0
    %1593 = vmatprep.mubr.bf16.mxu0 0
    %1594 = vmatmul.mubr.bf16.gmra.mrb[0].mxu0 %v1045
    %v1595 = vpop.f32.mrb[0].mxu0
    %v1596 = vadd.f32 %v1532, %v1595
    %v1597 = vpop.f32.mrb[0].mxu0
    %v1598 = vpop.f32.mrb[0].mxu0
    %v1599 = vpop.f32.mrb[0].mxu0
    %1600 = vdwg.mxu0
    %1601 = vst [vmem:[#allocation7] sm:$0xff] %v1153
    %1602 = vst [vmem:[#allocation7 + $0x8] sm:$0xff] %v1155
    %1603 = vst [vmem:[#allocation7 + $0x10] sm:$0xff] %v1295
    %1604 = vst [vmem:[#allocation7 + $0x18] sm:$0xff] %v1297
    %1605 = vst [vmem:[#allocation7 + $0x20] sm:$0xff] %v1437
    %1606 = vst [vmem:[#allocation7 + $0x28] sm:$0xff] %v1439
    %vm1607 = vcmask 130048
    %1608 = vst.msk [vmem:[#allocation7 + $0x30] sm:$0xff] %vm1607, %v1572
    %1609 = vst [vmem:[#allocation7 + $0x38] sm:$0xff] %v1157
    %1610 = vst [vmem:[#allocation7 + $0x40] sm:$0xff] %v1159
    %1611 = vst [vmem:[#allocation7 + $0x48] sm:$0xff] %v1299
    %1612 = vst [vmem:[#allocation7 + $0x50] sm:$0xff] %v1301
    %1613 = vst [vmem:[#allocation7 + $0x58] sm:$0xff] %v1441
    %1614 = vst [vmem:[#allocation7 + $0x60] sm:$0xff] %v1443
    %1615 = vst.msk [vmem:[#allocation7 + $0x68] sm:$0xff] %vm1607, %v1575
    %1616 = vst [vmem:[#allocation7 + $0x70] sm:$0xff] %v1163
    %1617 = vst [vmem:[#allocation7 + $0x78] sm:$0xff] %v1165
    %1618 = vst [vmem:[#allocation7 + $0x80] sm:$0xff] %v1305
    %1619 = vst [vmem:[#allocation7 + $0x88] sm:$0xff] %v1307
    %1620 = vst [vmem:[#allocation7 + $0x90] sm:$0xff] %v1447
    %1621 = vst [vmem:[#allocation7 + $0x98] sm:$0xff] %v1449
    %1622 = vst.msk [vmem:[#allocation7 + $0xa0] sm:$0xff] %vm1607, %v1580
    %1623 = vst [vmem:[#allocation7 + $0xa8] sm:$0xff] %v1167
    %1624 = vst [vmem:[#allocation7 + $0xb0] sm:$0xff] %v1169
    %1625 = vst [vmem:[#allocation7 + $0xb8] sm:$0xff] %v1309
    %1626 = vst [vmem:[#allocation7 + $0xc0] sm:$0xff] %v1311
    %1627 = vst [vmem:[#allocation7 + $0xc8] sm:$0xff] %v1451
    %1628 = vst [vmem:[#allocation7 + $0xd0] sm:$0xff] %v1453
    %1629 = vst.msk [vmem:[#allocation7 + $0xd8] sm:$0xff] %vm1607, %v1583
    %1630 = vst [vmem:[#allocation7 + $0xe0] sm:$0xff] %v1173
    %1631 = vst [vmem:[#allocation7 + $0xe8] sm:$0xff] %v1175
    %1632 = vst [vmem:[#allocation7 + $0xf0] sm:$0xff] %v1315
    %1633 = vst [vmem:[#allocation7 + $0xf8] sm:$0xff] %v1317
    %1634 = vst [vmem:[#allocation7 + $0x100] sm:$0xff] %v1457
    %1635 = vst [vmem:[#allocation7 + $0x108] sm:$0xff] %v1459
    %1636 = vst.msk [vmem:[#allocation7 + $0x110] sm:$0xff] %vm1607, %v1588
    %1637 = vst [vmem:[#allocation7 + $0x118] sm:$0xff] %v1177
    %1638 = vst [vmem:[#allocation7 + $0x120] sm:$0xff] %v1179
    %1639 = vst [vmem:[#allocation7 + $0x128] sm:$0xff] %v1319
    %1640 = vst [vmem:[#allocation7 + $0x130] sm:$0xff] %v1321
    %1641 = vst [vmem:[#allocation7 + $0x138] sm:$0xff] %v1461
    %1642 = vst [vmem:[#allocation7 + $0x140] sm:$0xff] %v1463
    %1643 = vst.msk [vmem:[#allocation7 + $0x148] sm:$0xff] %vm1607, %v1591
    %1644 = vst [vmem:[#allocation7 + $0x150] sm:$0xff] %v1183
    %1645 = vst [vmem:[#allocation7 + $0x158] sm:$0xff] %v1185
    %1646 = vst [vmem:[#allocation7 + $0x160] sm:$0xff] %v1325
    %1647 = vst [vmem:[#allocation7 + $0x168] sm:$0xff] %v1327
    %1648 = vst [vmem:[#allocation7 + $0x170] sm:$0xff] %v1467
    %1649 = vst [vmem:[#allocation7 + $0x178] sm:$0xff] %v1469
    %1650 = vst.msk [vmem:[#allocation7 + $0x180] sm:$0xff] %vm1607, %v1596
    // Predicated region
    $region18: #{tpu_custom_call.1} parent=1 // pred_check
      _
    $region19: #{tpu_custom_call.1} parent=1 // pred_check_branch
      %1652 = sbr.rel (0) target = $region21
    $region20: #{tpu_custom_call.1} parent=1 // pred_region
      %s1654 = ssub.s32 6272, 6272
      %1655 = vsyncadd [#allocation4], %s1654
      %s1656 = sshll.u32 [#allocation7], 4
      %s1657 = int_to_ptr.vmem [resolvable:$true] %s1656
      %1662 = dma.vmem_to_hbm [thread:$0]  %s1657, 6272, %s2, [#allocation4], 896, 896, 56
    $region21: #{tpu_custom_call.1} parent=1 // pred_fallthru
      _
    // Predicated region
    $region22: #{tpu_custom_call.1} parent=1 // pred_check
      _
    $region23: #{tpu_custom_call.1} parent=1 // pred_check_branch
      %1664 = sbr.rel (0) target = $region25
    $region24: #{tpu_custom_call.1} parent=1 // pred_region
      %1665 = dma.done [#allocation4], 6272
    $region25: #{tpu_custom_call.1} parent=1 // pred_fallthru
      _
    %1666 = vsyncpa [#allocation3], 1
    %1667 = vsyncpa [#allocation6], 1
    %1668 = vsyncpa [#allocation4], 1

</llo_original>
